<compile_context>
chip_gen: v6e
topology: v6e:2x2x1
jax: 0.10.0
libtpu: 0.0.40
codegen_flags: <defaults>
</compile_context>

<pallas_src>
import functools

import jax
import jax.numpy as jnp
from jax.experimental import pallas as pl
from jax.experimental.pallas import tpu as pltpu


def _linear_kernel_single_k(x_ref, w_ref, b_ref, o_ref):
    """Single-K fast path: no scratch, no pl.when.

    x_ref: (tm, tk) bf16   w_ref: (tk, tn) bf16   b_ref: (1, tn) f32
    o_ref: (tm, tn) output dtype
    """
    acc = jnp.dot(x_ref[...], w_ref[...], preferred_element_type=jnp.float32)
    o_ref[...] = (acc + b_ref[...]).astype(o_ref.dtype)


def _linear_kernel_multi_k(x_ref, w_ref, b_ref, o_ref, acc_ref):
    """K-tiled reduction with an f32 VMEM accumulator.

    First K step writes the partial product directly (no zero-init pass);
    later steps accumulate; bias + cast + store happen only on the last step.
    """
    k = pl.program_id(2)
    partial = jnp.dot(x_ref[...], w_ref[...], preferred_element_type=jnp.float32)

    @pl.when(k == 0)
    def _():
        acc_ref[...] = partial

    @pl.when(k > 0)
    def _():
        acc_ref[...] += partial

    @pl.when(k == pl.num_programs(2) - 1)
    def _():
        o_ref[...] = (acc_ref[...] + b_ref[...]).astype(o_ref.dtype)


def _pick_tile(dim: int, target: int, aligns) -> int:
    """Largest aligned divisor of `dim` that is <= target.

    Tries each alignment in `aligns` (e.g. 256 first for the 2x256^2 MXU, then
    128 for lane density / v5e's 4x128^2). Falls back to the full dimension
    (exempt from the (8,128) rule) when the dim is small or has no aligned
    divisor, so edge blocks are always exact and the K reduction never sees
    padded garbage.
    """
    if dim <= target:
        return dim
    for align in aligns:
        t = (target // align) * align
        while t >= align:
            if dim % t == 0:
                return t
            t -= align
    return dim


@functools.partial(
    jax.jit, static_argnames=("seq_len", "n_cols", "pred_len", "use_bf16")
)
def linear_forward(x, weight, bias, seq_len, n_cols, pred_len, use_bf16=True):
    """x: (B, seq_len, N_cols); weight: (pred_len, seq_len*N_cols); bias: (pred_len,)."""
    B = x.shape[0]
    F = seq_len * n_cols
    P = pred_len

    in_dtype = jnp.bfloat16 if use_bf16 else x.dtype
    x2d = x.reshape(B, F).astype(in_dtype)       # row-major flatten, matches torch .reshape
    # One-time layout change (weights are constants): (P, F) -> (F, P) so the
    # kernel does a plain NN dot and never pays a per-tile XLU transpose.
    w_t = weight.T.astype(in_dtype)              # (F, P)
    b2d = bias.reshape(1, P).astype(jnp.float32)

    # Tile targets: tm capped at 128 so B >= 256 gives >= 2 parallel M blocks
    # (v7x megacore); tn/tk up to 1024, 256-aligned (MXU columns) with a 128
    # fallback. Footprint at the caps (bf16 inputs, f32 out + acc, double
    # buffered) is ~6 MiB — fits v5e/v6e/v7x with plenty of headroom.
    tm = _pick_tile(B, 128, (8,))
    tn = _pick_tile(P, 1024, (256, 128))
    tk = _pick_tile(F, 1024, (256, 128))

    # v7x megacore: if both parallel axes collapsed to a single block, split
    # one of them (when the shape allows) so both TensorCores get work.
    if pl.cdiv(B, tm) == 1 and pl.cdiv(P, tn) == 1:
        if tn % 256 == 0 and P % (tn // 2) == 0:
            tn //= 2
        elif tm % 16 == 0 and B % (tm // 2) == 0:
            tm //= 2

    grid_m = pl.cdiv(B, tm)
    grid_n = pl.cdiv(P, tn)
    grid_k = pl.cdiv(F, tk)

    # Honest HBM-traffic estimate: under grid order (i, j, k), x is re-streamed
    # once per N tile and W once per M tile.
    bytes_accessed = (
        grid_n * B * F * x2d.dtype.itemsize
        + grid_m * F * P * w_t.dtype.itemsize
        + B * P * x.dtype.itemsize
        + grid_m * P * 4
    )
    cost = pl.CostEstimate(
        flops=2 * B * F * P, transcendentals=0, bytes_accessed=bytes_accessed
    )

    # 48 MiB scoped VMEM: above v5e's 16 MiB default (needed for the big-tile
    # configs), below v7x's 64 MiB physical capacity.
    compiler_params = pltpu.CompilerParams(
        dimension_semantics=(
            ("parallel", "parallel")
            if grid_k == 1
            else ("parallel", "parallel", "arbitrary")
        ),
        vmem_limit_bytes=48 * 1024 * 1024,
    )

    if grid_k == 1:
        # Scratch-free fast path: whole reduction in one MXU call per tile.
        grid = (grid_m, grid_n)
        kernel = _linear_kernel_single_k
        in_specs = [
            pl.BlockSpec((tm, tk), lambda i, j: (i, 0)),   # x   (B, F)
            pl.BlockSpec((tk, tn), lambda i, j: (0, j)),   # W^T (F, P)
            pl.BlockSpec((1, tn), lambda i, j: (0, j)),    # b   (1, P)
        ]
        out_specs = pl.BlockSpec((tm, tn), lambda i, j: (i, j))
        scratch_shapes = []
    else:
        grid = (grid_m, grid_n, grid_k)
        kernel = _linear_kernel_multi_k
        in_specs = [
            pl.BlockSpec((tm, tk), lambda i, j, k: (i, k)),   # x   (B, F)
            pl.BlockSpec((tk, tn), lambda i, j, k: (k, j)),   # W^T (F, P)
            pl.BlockSpec((1, tn), lambda i, j, k: (0, j)),    # b   (1, P)
        ]
        out_specs = pl.BlockSpec((tm, tn), lambda i, j, k: (i, j))
        scratch_shapes = [pltpu.VMEM((tm, tn), jnp.float32)]

    out = pl.pallas_call(
        kernel,
        out_shape=jax.ShapeDtypeStruct((B, P), x.dtype),
        grid_spec=pltpu.PrefetchScalarGridSpec(
            num_scalar_prefetch=0,
            grid=grid,
            in_specs=in_specs,
            out_specs=out_specs,
            scratch_shapes=scratch_shapes,
        ),
        compiler_params=compiler_params,
        cost_estimate=cost,
    )(x2d, w_t, b2d)

    return out.reshape(B, 1, P)


if __name__ == "__main__":
    # Shapes consistent with the module:
    #   input_horizon (seq_len) = 8, N_cols = 4, output_horizon (pred_len) = 16
    B, seq_len, n_cols, pred_len = 2, 8, 4, 16
    F = seq_len * n_cols

    key = jax.random.PRNGKey(0)
    kx, kw, kb = jax.random.split(key, 3)

    x = jax.random.normal(kx, (B, seq_len, n_cols), dtype=jnp.float32)
    # Deterministic parameter init (mimics nn.Linear uniform(-1/sqrt(F), 1/sqrt(F)))
    bound = 1.0 / (F ** 0.5)
    weight = jax.random.uniform(kw, (pred_len, F), jnp.float32, -bound, bound)
    bias = jax.random.uniform(kb, (pred_len,), jnp.float32, -bound, bound)

    y = jax.block_until_ready(
        linear_forward(x, weight, bias, seq_len=seq_len, n_cols=n_cols,
                       pred_len=pred_len)
    )
    assert y.shape == (B, 1, pred_len)

    # Tight check against a bf16-consistent reference (the kernel computes
    # bf16 x bf16 products with f32 accumulation on the MXU).
    xb = x.reshape(B, F).astype(jnp.bfloat16).astype(jnp.float32)
    wb = weight.astype(jnp.bfloat16).astype(jnp.float32)
    ref_bf16 = (xb @ wb.T + bias).reshape(B, 1, pred_len)
    assert jnp.allclose(y, ref_bf16, atol=1e-4, rtol=1e-4)

    # Loose check against the pure-f32 torch semantics (bf16 operand rounding).
    ref_f32 = (x.reshape(B, F) @ weight.T + bias).reshape(B, 1, pred_len)
    assert jnp.allclose(y, ref_f32, atol=3e-2, rtol=3e-2)

    # Larger shape exercising the multi-tile / multi-K path, the megacore
    # M split (grid_m = 2) and the accumulator epilogue.
    B2, F2, P2 = 256, 2048, 512
    k2x, k2w, k2b = jax.random.split(jax.random.PRNGKey(1), 3)
    x2 = jax.random.normal(k2x, (B2, 8, F2 // 8), dtype=jnp.float32)
    w2 = jax.random.normal(k2w, (P2, F2), dtype=jnp.float32) * 0.02
    b2 = jax.random.normal(k2b, (P2,), dtype=jnp.float32)
    y2 = jax.block_until_ready(
        linear_forward(x2, w2, b2, seq_len=8, n_cols=F2 // 8, pred_len=P2)
    )
    x2b = x2.reshape(B2, F2).astype(jnp.bfloat16).astype(jnp.float32)
    w2b = w2.astype(jnp.bfloat16).astype(jnp.float32)
    ref2 = (x2b @ w2b.T + b2).reshape(B2, 1, P2)
    assert jnp.allclose(y2, ref2, atol=2e-3, rtol=2e-3)

    print("KERNEL_OK")
</pallas_src>

<mosaic_0001>
module attributes {stable_mosaic.version = 11 : i64} {
  func.func @_linear_kernel_single_k(%arg0: i32, %arg1: i32, %arg2: memref<2x32xbf16, #tpu.memory_space<vmem>>, %arg3: memref<32x16xbf16, #tpu.memory_space<vmem>>, %arg4: memref<1x16xf32, #tpu.memory_space<vmem>>, %arg5: memref<2x16xf32, #tpu.memory_space<vmem>>) attributes {dimension_semantics = [#tpu.dimension_semantics<parallel>, #tpu.dimension_semantics<parallel>], iteration_bounds = array<i64: 1, 1>, scalar_prefetch = 0 : i64, scratch_operands = 0 : i64, tpu.core_type = #tpu.core_type<tc>, window_params = [{transform_indices = @transform_0, window_bounds = array<i64: 2, 32>}, {transform_indices = @transform_1, window_bounds = array<i64: 32, 16>}, {transform_indices = @transform_2, window_bounds = array<i64: 1, 16>}, {transform_indices = @transform_3, window_bounds = array<i64: 2, 16>}]} {
    %c0 = arith.constant 0 : index
    %c0_0 = arith.constant 0 : index
    %0 = vector.load %arg2[%c0, %c0_0] : memref<2x32xbf16, #tpu.memory_space<vmem>>, vector<2x32xbf16>
    %c0_1 = arith.constant 0 : index
    %c0_2 = arith.constant 0 : index
    %1 = vector.load %arg3[%c0_1, %c0_2] : memref<32x16xbf16, #tpu.memory_space<vmem>>, vector<32x16xbf16>
    %cst = arith.constant dense<0.000000e+00> : vector<2x16xf32>
    %2 = tpu.matmul %0, %1, %cst {dimension_numbers = #tpu.dot_dimension_numbers<[1], [0], [0], [1], [0, 0, 1, 1], [], []>} : vector<2x32xbf16>, vector<32x16xbf16>, vector<2x16xf32> -> vector<2x16xf32>
    %c0_3 = arith.constant 0 : index
    %c0_4 = arith.constant 0 : index
    %3 = vector.load %arg4[%c0_3, %c0_4] : memref<1x16xf32, #tpu.memory_space<vmem>>, vector<1x16xf32>
    %4 = vector.broadcast %3 : vector<1x16xf32> to vector<2x16xf32>
    %5 = arith.addf %2, %4 : vector<2x16xf32>
    %c0_5 = arith.constant 0 : index
    %c0_6 = arith.constant 0 : index
    %6 = vector.load %arg5[%c0_5, %c0_6] : memref<2x16xf32, #tpu.memory_space<vmem>>, vector<2x16xf32>
    tpu.vector_store %arg5[%c0_5, %c0_6], %5 {strides = array<i32>} : memref<2x16xf32, #tpu.memory_space<vmem>>, vector<2x16xf32>,
    return
  }
  func.func @transform_0(%arg0: i32, %arg1: i32) -> (i32, i32) {
    %c0_i32 = arith.constant 0 : i32
    %c0_i32_0 = arith.constant 0 : i32
    return %arg0, %c0_i32 : i32, i32
  }
  func.func @transform_1(%arg0: i32, %arg1: i32) -> (i32, i32) {
    %c0_i32 = arith.constant 0 : i32
    %c0_i32_0 = arith.constant 0 : i32
    return %c0_i32, %arg1 : i32, i32
  }
  func.func @transform_2(%arg0: i32, %arg1: i32) -> (i32, i32) {
    %c0_i32 = arith.constant 0 : i32
    %c0_i32_0 = arith.constant 0 : i32
    return %c0_i32, %arg1 : i32, i32
  }
  func.func @transform_3(%arg0: i32, %arg1: i32) -> (i32, i32) {
    %c0_i32 = arith.constant 0 : i32
    return %arg0, %arg1 : i32, i32
  }
}

</mosaic_0001>

<llo_original>
// kernel: linear_forward.1
$region0: #{linear_forward.1}
  #allocation0 [shape = 'u32[]', space=smem, size = 0x4, offset = 0x4, fixed_abs, tag = 'smem constant byte address 0x4 - core index']
  #allocation1 [shape = 'u32[144,128]{1,0:T(1,128)}', space=vmem, size = 0x12000, scoped, tag = 'internal scratch']
  %s0 = inlined_call_operand.vmem [shape: bf16[2,32], index: 0, kind: input, shape index: {}]
  %s1 = inlined_call_operand.vmem [shape: bf16[32,16], index: 1, kind: input, shape index: {}]
  %s2 = inlined_call_operand.vmem [shape: f32[1,16], index: 2, kind: input, shape index: {}]
  %s3 = inlined_call_operand.hbm [shape: f32[2,16], index: 3, kind: output, shape index: {}]
  %s4 = sld [smem:[#allocation0]]
  $region22: #{linear_forward.1} parent=0
    _
  %s6 = ssub.s32 1, %s4
  %s7 = scalar_select 0, %s6, %s4
  $region1: #{linear_forward.1} parent=0
    #allocation2 [shape = 'u8[1024]{0}', space=vmem, size = 0x400, scoped, tag = 'output window, operand 0, single buffered']
    #allocation3 [shape = 's32[1]{0}', space=sflag, size = 0x4, scoped, tag = 'scoped memory for linear_forward.1']
    %8 = vsyncpa [#allocation3], 0
    // Predicated region
    $region2: #{linear_forward.1} parent=1 // pred_check
      _
    $region3: #{linear_forward.1} parent=1 // pred_check_branch
      %10 = sbr.rel (0) target = $region5
    $region4: #{linear_forward.1} parent=1 // pred_region
      _
    $region5: #{linear_forward.1} parent=1 // pred_fallthru
      _
    // Predicated region
    $region6: #{linear_forward.1} parent=1 // pred_check
      _
    $region7: #{linear_forward.1} parent=1 // pred_check_branch
      %12 = sbr.rel (0) target = $region9
    $region8: #{linear_forward.1} parent=1 // pred_region
      _
    $region9: #{linear_forward.1} parent=1 // pred_fallthru
      _
    // Predicated region
    $region10: #{linear_forward.1} parent=1 // pred_check
      _
    $region11: #{linear_forward.1} parent=1 // pred_check_branch
      %14 = sbr.rel (0) target = $region13
    $region12: #{linear_forward.1} parent=1 // pred_region
      _
    $region13: #{linear_forward.1} parent=1 // pred_fallthru
      _
    %v16 = vld [vmem:[%s0] sm:$0x1]
    %v17 = vld [vmem:[%s1] sm:$0xf]
    %v18 = vld [vmem:[%s1 + $0x4] sm:$0xf]
    %v19 = vld [vmem:[%s1 + $0x8] sm:$0xf]
    %v20 = vld [vmem:[%s1 + $0xc] sm:$0xf]
    %v21 = vld [vmem:[%s2] sm:$0x1]
    %v23 = vlaneseq
    %v24 = vshrl.u32 %v23, 7
    %v25 = vsub.s32 0, %v24
    %v26 = vrot.slane %v21, %v25
    %v32 = vunpack.c.l.b16 %v17
    %v33 = vunpack.c.l.b16 %v18
    %v34 = vunpack.c.l.b16 %v19
    %v35 = vunpack.c.l.b16 %v20
    %v36 = vpack.c.b16 %v33, %v32
    %v37 = vpack.c.b16 %v35, %v34
    %vm40 = vcmask 261120
    %v42 = vsel %vm40, %v16, 0
    %44 = vmatprep.subr.bf16.mxu0 0
    %45 = vmatpush1.bf16.msra.mxu0 0
    %46 = vmatprep.subr.bf16.mxu0 0
    %47 = vmatpush1.bf16.msra.mxu0 0
    %48 = vmatprep.subr.bf16.mxu0 0
    %49 = vmatpush1.bf16.msra.mxu0 0
    %50 = vmatprep.subr.bf16.mxu0 0
    %51 = vmatpush1.bf16.msra.mxu0 0
    %52 = vmatprep.subr.bf16.mxu0 0
    %53 = vmatpush1.bf16.msra.mxu0 0
    %54 = vmatprep.subr.bf16.mxu0 0
    %55 = vmatpush1.bf16.msra.mxu0 0
    %56 = vmatprep.subr.bf16.mxu0 0
    %57 = vmatpush1.bf16.msra.mxu0 %v37
    %58 = vmatprep.subr.bf16.mxu0 0
    %59 = vmatpush1.bf16.msra.mxu0 %v36
    %60 = vmatprep.subr.bf16.mxu0 0
    %61 = vmatpush2.bf16.msra.mxu0 0
    %62 = vmatprep.subr.bf16.mxu0 0
    %63 = vmatpush2.bf16.msra.mxu0 0
    %64 = vmatprep.subr.bf16.mxu0 0
    %65 = vmatpush2.bf16.msra.mxu0 0
    %66 = vmatprep.subr.bf16.mxu0 0
    %67 = vmatpush2.bf16.msra.mxu0 0
    %68 = vmatprep.subr.bf16.mxu0 0
    %69 = vmatpush2.bf16.msra.mxu0 0
    %70 = vmatprep.subr.bf16.mxu0 0
    %71 = vmatpush2.bf16.msra.mxu0 0
    %72 = vmatprep.subr.bf16.mxu0 0
    %73 = vmatpush2.bf16.msra.mxu0 0
    %74 = vmatprep.subr.bf16.mxu0 0
    %75 = vmatpush2.bf16.msra.mxu0 0
    %76 = vmatprep.mubr.bf16.mxu0 0
    %77 = vmatmul.mubr.bf16.gmra.mxu0 %v42
    %v78 = vpop.f32.mrf.mxu0
    %v79 = vadd.f32 %v26, %v78
    %v80 = vpop.f32.mrf.mxu0
    %v81 = vpop.f32.mrf.mxu0
    %v82 = vpop.f32.mrf.mxu0
    %83 = vdwg.mxu0
    %vm84 = vcmask 123904
    %85 = vst.msk [vmem:[#allocation2] sm:$0x3] %vm84, %v79
    // Predicated region
    $region14: #{linear_forward.1} parent=1 // pred_check
      _
    $region15: #{linear_forward.1} parent=1 // pred_check_branch
      %87 = sbr.rel (0) target = $region17
    $region16: #{linear_forward.1} parent=1 // pred_region
      %s89 = ssub.s32 32, 32
      %90 = vsyncadd [#allocation3], %s89
      %s92 = sshll.u32 [#allocation2], 4
      %s93 = int_to_ptr.vmem [resolvable:$true] %s92
      %95 = dma.vmem_to_hbm [thread:$0]  %s93, 32, %s3, [#allocation3]
    $region17: #{linear_forward.1} parent=1 // pred_fallthru
      _
    // Predicated region
    $region18: #{linear_forward.1} parent=1 // pred_check
      _
    $region19: #{linear_forward.1} parent=1 // pred_check_branch
      %97 = sbr.rel (0) target = $region21
    $region20: #{linear_forward.1} parent=1 // pred_region
      %98 = dma.done [#allocation3], 32
    $region21: #{linear_forward.1} parent=1 // pred_fallthru
      _
    %99 = vsyncpa [#allocation3], 1

</llo_original>
